<compile_context>
chip_gen: v7x
topology: tpu7x:2x2x1
jax: 0.10.0
libtpu: 0.0.40
codegen_flags: <defaults>
</compile_context>

<pallas_src>
import functools

import jax
import jax.numpy as jnp
from jax.experimental import pallas as pl
from jax.experimental.pallas import tpu as pltpu

EPS = 1e-12           # F.normalize default eps
DEFAULT_TILE_N = 512  # lane-dense tile over the N (elements) axis


def _conscious_attention_kernel(
    # ---- inputs ----
    b2_ref,     # [1]          f32   SMEM: value_net output bias
    x_ref,      # [TILE_N, D]  bf16  sensory input block (natural layout)
    wbig_ref,   # [Hb, D]      bf16  row 0 = q_eff, rows 8..8+2H-1 = value_net W1
    b1_ref,     # [H2p, 1]     f32   value_net hidden bias (sublane-padded)
    w2_ref,     # [1, H2p]     bf16  value_net output weight (lane-padded)
    # ---- outputs (all lane-dense, tiled over N) ----
    u_ref,      # [1, TILE_N]  f32   exp(logit - m_tile) * value
    v_ref,      # [1, TILE_N]  f32   value scores
    m_ref,      # [1, TILE_N]  f32   tile-local logit max (broadcast over lanes)
    *,
    n_valid,    # true N (static)
    tile_n,     # tile size (static)
    h2p,        # 2H rounded up to a multiple of 8 (static)
):
    i = pl.program_id(0)

    x = x_ref[...]                                            # [TILE_N, D] bf16

    # One fused MXU pass: [Hb, D] x [TILE_N, D]^T -> [Hb, TILE_N].
    # Row 0 is the attention logit row (x . q_eff), rows 8.. are the value-net
    # hidden pre-activations.  The RHS transpose happens in-kernel (XLU slot),
    # so x streams from HBM in its natural [N, D] layout.
    hb = jax.lax.dot_general(
        wbig_ref[...], x,
        dimension_numbers=(((1,), (1,)), ((), ())),
        preferred_element_type=jnp.float32)                   # [Hb, TILE_N]

    # attention logits; the constant (q . bk)/scale term cancels in softmax.
    logits = hb[0:1, :]                                       # [1, TILE_N]

    # value net: sigmoid(W2 relu(W1 x + b1) + b2)
    h = jnp.maximum(hb[8:8 + h2p, :] + b1_ref[...], 0.0)      # [H2p, TILE_N]
    v_pre = jnp.dot(w2_ref[...], h.astype(jnp.bfloat16),
                    preferred_element_type=jnp.float32)       # [1, TILE_N]
    v = jax.nn.sigmoid(v_pre + b2_ref[0])

    # tile-local softmax numerator; no cross-tile carry (combined in wrapper)
    col = i * tile_n + jax.lax.broadcasted_iota(jnp.int32, (1, tile_n), 1)
    in_range = col < n_valid
    logits = jnp.where(in_range, logits, -1e30)               # mask padded lanes
    m_tile = jnp.max(logits, axis=-1, keepdims=True)          # [1, 1]
    u = jnp.where(in_range, jnp.exp(logits - m_tile) * v, 0.0)

    u_ref[...] = u
    v_ref[...] = v
    m_ref[...] = jnp.broadcast_to(m_tile, (1, tile_n))


def conscious_attention(x, conscious_bias, params, capacity=5,
                        tile_n=DEFAULT_TILE_N):
    """Forward pass. x: [N, D] f32, conscious_bias: [D] f32."""
    N, D = x.shape
    H = params["wq"].shape[0]
    H2 = 2 * H
    H2p = -(-H2 // 8) * 8      # value-net rows, sublane aligned
    Hb = 8 + H2p               # + one 8-row band holding q_eff at row 0
    scale = float(H) ** 0.5
    n_tiles = -(-N // tile_n)
    N_pad = n_tiles * tile_n

    f32, bf16 = jnp.float32, jnp.bfloat16

    # ---- one-time O(H*D) prologue, hoisted out of the kernel (Wq/Wk never
    # enter VMEM) ----
    q = conscious_bias @ params["wq"].T + params["bq"]
    q = q / jnp.maximum(jnp.linalg.norm(q), EPS) * 2.0        # F.normalize * 2
    qs = q / scale
    q_eff = qs @ params["wk"]          # [D]; logits_n = x_n . q_eff (+ const)

    # fused weight block: row 0 = q_eff, rows 8..8+2H-1 = value_net W1
    w_big = jnp.zeros((Hb, D), f32)
    w_big = w_big.at[0].set(q_eff)
    w_big = w_big.at[8:8 + H2].set(params["w1"])
    w_big = w_big.astype(bf16)

    b1p = jnp.zeros((H2p, 1), f32).at[:H2, 0].set(params["b1"])
    w2p = jnp.zeros((1, H2p), f32).at[0, :H2].set(params["w2"][0]).astype(bf16)
    b2 = params["b2"].astype(f32)      # [1] -> SMEM

    # x stays in natural [N, D] layout: single fused pad + cast, no transpose.
    x_pad = jnp.pad(x, ((0, N_pad - N), (0, 0))).astype(bf16)

    kernel = functools.partial(
        _conscious_attention_kernel, n_valid=N, tile_n=tile_n, h2p=H2p)

    u2d, v2d, m2d = pl.pallas_call(
        kernel,
        out_shape=(
            jax.ShapeDtypeStruct((1, N_pad), f32),   # exp(logit - m_tile) * value
            jax.ShapeDtypeStruct((1, N_pad), f32),   # value scores
            jax.ShapeDtypeStruct((1, N_pad), f32),   # per-tile max (broadcast)
        ),
        grid=(n_tiles,),
        in_specs=[
            pl.BlockSpec(memory_space=pltpu.MemorySpace.SMEM),    # b2 scalar
            # NOTE(v5e): if the x DMA becomes exposed at large TILE_N, add
            # pipeline_mode=pl.Buffered(3) here.
            pl.BlockSpec((tile_n, D), lambda i: (i, 0)),          # x (streamed)
            pl.BlockSpec((Hb, D), lambda i: (0, 0)),              # [q_eff; W1]
            pl.BlockSpec((H2p, 1), lambda i: (0, 0)),             # b1
            pl.BlockSpec((1, H2p), lambda i: (0, 0)),             # W2
        ],
        out_specs=(
            pl.BlockSpec((1, tile_n), lambda i: (0, i)),
            pl.BlockSpec((1, tile_n), lambda i: (0, i)),
            pl.BlockSpec((1, tile_n), lambda i: (0, i)),
        ),
        compiler_params=pltpu.CompilerParams(
            # Tiles are now independent -> shard the grid across v7x's two
            # TensorCores; harmless on v5e/v6e.
            dimension_semantics=("parallel",),
            # Budgeted to fit v7x's 64 MiB VMEM (also covers v5e's 16 MiB
            # scoped default being too small).
            vmem_limit_bytes=48 * 1024 * 1024,
        ),
    )(b2, x_pad, w_big, b1p, w2p)

    # ---- O(N) cross-tile softmax combine + L1 renorm (fuses into top_k input)
    u = u2d[0]
    m = m2d[0]
    value_scores = v2d[0, :N]
    alloc_un = (u * jnp.exp(m - jnp.max(m)))[:N]
    allocation = alloc_un / jnp.maximum(jnp.sum(alloc_un), EPS)

    # TODO(synk): top-k + dynamic row gather kept in plain JAX glue (data-dependent
    # gather has no clean single-kernel Pallas form here).
    _, top_idx = jax.lax.top_k(allocation, capacity)
    attended = x[top_idx]
    return attended, allocation, value_scores


def init_params(key, input_dim, hidden_dim):
    ks = jax.random.split(key, 8)
    s = 0.1
    return {
        "wq": jax.random.normal(ks[0], (hidden_dim, input_dim), jnp.float32) * s,
        "bq": jax.random.normal(ks[1], (hidden_dim,), jnp.float32) * s,
        "wk": jax.random.normal(ks[2], (hidden_dim, input_dim), jnp.float32) * s,
        "bk": jax.random.normal(ks[3], (hidden_dim,), jnp.float32) * s,
        "w1": jax.random.normal(ks[4], (2 * hidden_dim, input_dim), jnp.float32) * s,
        "b1": jax.random.normal(ks[5], (2 * hidden_dim,), jnp.float32) * s,
        "w2": jax.random.normal(ks[6], (1, 2 * hidden_dim), jnp.float32) * s,
        "b2": jax.random.normal(ks[7], (1,), jnp.float32) * s,
    }


def _reference(x, conscious_bias, params, capacity):
    """Pure-JAX f32 mirror of the PyTorch module (for a tolerance check)."""
    H = params["wq"].shape[0]
    q = conscious_bias @ params["wq"].T + params["bq"]
    q = q / jnp.maximum(jnp.sqrt(jnp.sum(q * q)), EPS) * 2.0
    k = x @ params["wk"].T + params["bk"]
    h = jnp.maximum(x @ params["w1"].T + params["b1"], 0.0)
    v = jax.nn.sigmoid(h @ params["w2"].T + params["b2"])[:, 0]
    logits = (k @ q) / (float(H) ** 0.5)
    attn = jax.nn.softmax(logits)
    alloc = attn * v
    alloc = alloc / jnp.maximum(jnp.sum(jnp.abs(alloc)), EPS)
    _, idx = jax.lax.top_k(alloc, capacity)
    return x[idx], alloc, v


if __name__ == "__main__":
    N, D, H, CAP = 8, 32, 32, 5

    key = jax.random.PRNGKey(0)
    k_param, k_x, k_b = jax.random.split(key, 3)
    params = init_params(k_param, D, H)
    x = jax.random.normal(k_x, (N, D), jnp.float32)
    bias = jax.random.normal(k_b, (D,), jnp.float32)

    attended, allocation, value_scores = conscious_attention(x, bias, params, CAP)
    jax.block_until_ready((attended, allocation, value_scores))

    assert attended.shape == (CAP, D)
    assert allocation.shape == (N,)
    assert value_scores.shape == (N,)

    # Loose tolerance: kernel uses bf16 MXU operands (f32 accumulation/epilogue).
    _, ref_alloc, ref_val = _reference(x, bias, params, CAP)
    assert float(jnp.max(jnp.abs(allocation - ref_alloc))) < 2e-2
    assert float(jnp.max(jnp.abs(value_scores - ref_val))) < 2e-2

    print("KERNEL_OK")
</pallas_src>

<mosaic_0001>
module attributes {stable_mosaic.version = 11 : i64} {
  func.func @_conscious_attention_kernel(%arg0: i32, %arg1: memref<1xf32, #tpu.memory_space<smem>>, %arg2: memref<512x32xbf16, #tpu.memory_space<vmem>>, %arg3: memref<72x32xbf16, #tpu.memory_space<vmem>>, %arg4: memref<64x1xf32, #tpu.memory_space<vmem>>, %arg5: memref<1x64xbf16, #tpu.memory_space<vmem>>, %arg6: memref<1x512xf32, #tpu.memory_space<vmem>>, %arg7: memref<1x512xf32, #tpu.memory_space<vmem>>, %arg8: memref<1x512xf32, #tpu.memory_space<vmem>>) attributes {dimension_semantics = [#tpu.dimension_semantics<parallel>], iteration_bounds = array<i64: 1>, scalar_prefetch = 0 : i64, scratch_operands = 0 : i64, tpu.core_type = #tpu.core_type<tc>, window_params = [{transform_indices = @transform_0, window_bounds = array<i64: 1>}, {transform_indices = @transform_1, window_bounds = array<i64: 512, 32>}, {pipeline_mode = #tpu.pipeline_mode<synchronous>, transform_indices = @transform_2, window_bounds = array<i64: 72, 32>}, {pipeline_mode = #tpu.pipeline_mode<synchronous>, transform_indices = @transform_3, window_bounds = array<i64: 64, 1>}, {pipeline_mode = #tpu.pipeline_mode<synchronous>, transform_indices = @transform_4, window_bounds = array<i64: 1, 64>}, {transform_indices = @transform_5, window_bounds = array<i64: 1, 512>}, {transform_indices = @transform_6, window_bounds = array<i64: 1, 512>}, {transform_indices = @transform_7, window_bounds = array<i64: 1, 512>}]} {
    %c0 = arith.constant 0 : index
    %c0_0 = arith.constant 0 : index
    %0 = vector.load %arg2[%c0, %c0_0] : memref<512x32xbf16, #tpu.memory_space<vmem>>, vector<512x32xbf16>
    %c0_1 = arith.constant 0 : index
    %c0_2 = arith.constant 0 : index
    %1 = vector.load %arg3[%c0_1, %c0_2] : memref<72x32xbf16, #tpu.memory_space<vmem>>, vector<72x32xbf16>
    %cst = arith.constant dense<0.000000e+00> : vector<72x512xf32>
    %2 = tpu.matmul %1, %0, %cst {dimension_numbers = #tpu.dot_dimension_numbers<[1], [1], [0], [0], [0, 0, 1, 0], [], []>} : vector<72x32xbf16>, vector<512x32xbf16>, vector<72x512xf32> -> vector<72x512xf32>
    %3 = vector.extract_strided_slice %2 {offsets = [0, 0], sizes = [1, 512], strides = [1, 1]} : vector<72x512xf32> to vector<1x512xf32>
    %4 = vector.extract_strided_slice %2 {offsets = [8, 0], sizes = [64, 512], strides = [1, 1]} : vector<72x512xf32> to vector<64x512xf32>
    %c0_3 = arith.constant 0 : index
    %c0_4 = arith.constant 0 : index
    %5 = vector.load %arg4[%c0_3, %c0_4] : memref<64x1xf32, #tpu.memory_space<vmem>>, vector<64x1xf32>
    %6 = vector.broadcast %5 : vector<64x1xf32> to vector<64x512xf32>
    %7 = arith.addf %4, %6 : vector<64x512xf32>
    %cst_5 = arith.constant 0.000000e+00 : f32
    %8 = vector.broadcast %cst_5 : f32 to vector<64x512xf32>
    %9 = arith.maximumf %7, %8 : vector<64x512xf32>
    %c0_6 = arith.constant 0 : index
    %c0_7 = arith.constant 0 : index
    %10 = vector.load %arg5[%c0_6, %c0_7] : memref<1x64xbf16, #tpu.memory_space<vmem>>, vector<1x64xbf16>
    %11 = arith.truncf %9 : vector<64x512xf32> to vector<64x512xbf16>
    %cst_8 = arith.constant dense<0.000000e+00> : vector<1x512xf32>
    %12 = tpu.matmul %10, %11, %cst_8 {dimension_numbers = #tpu.dot_dimension_numbers<[1], [0], [0], [1], [0, 0, 1, 1], [], []>} : vector<1x64xbf16>, vector<64x512xbf16>, vector<1x512xf32> -> vector<1x512xf32>
    %c0_9 = arith.constant 0 : index
    %13 = memref.load %arg1[%c0_9] : memref<1xf32, #tpu.memory_space<smem>>
    %14 = vector.broadcast %13 : f32 to vector<1x512xf32>
    %15 = arith.addf %12, %14 : vector<1x512xf32>
    %16 = arith.negf %15 : vector<1x512xf32>
    %17 = math.exp %16 : vector<1x512xf32>
    %cst_10 = arith.constant 1.000000e+00 : f32
    %18 = vector.broadcast %cst_10 : f32 to vector<1x512xf32>
    %19 = arith.addf %18, %17 : vector<1x512xf32>
    %20 = arith.divf %18, %19 : vector<1x512xf32>
    %c512_i32 = arith.constant 512 : i32
    %21 = arith.muli %arg0, %c512_i32 : i32
    %22 = tpu.iota {dimensions = array<i32: 1>} : vector<1x512xi32>
    %23 = vector.broadcast %21 : i32 to vector<1x512xi32>
    %24 = arith.addi %23, %22 : vector<1x512xi32>
    %c8_i32 = arith.constant 8 : i32
    %25 = vector.broadcast %c8_i32 : i32 to vector<1x512xi32>
    %26 = arith.cmpi slt, %24, %25 : vector<1x512xi32>
    %cst_11 = arith.constant -1.000000e+30 : f32
    %27 = vector.broadcast %cst_11 : f32 to vector<1x512xf32>
    %28 = arith.select %26, %3, %27 : vector<1x512xi1>, vector<1x512xf32>
    %cst_12 = arith.constant dense<0xFF800000> : vector<1xf32>
    %29 = vector.multi_reduction <maximumf>, %28, %cst_12 [1] : vector<1x512xf32> to vector<1xf32>
    %30 = vector.shape_cast %29 : vector<1xf32> to vector<1x1xf32>
    %31 = vector.broadcast %30 : vector<1x1xf32> to vector<1x512xf32>
    %32 = arith.subf %28, %31 : vector<1x512xf32>
    %33 = math.exp %32 : vector<1x512xf32>
    %34 = arith.mulf %33, %20 : vector<1x512xf32>
    %cst_13 = arith.constant 0.000000e+00 : f32
    %35 = vector.broadcast %cst_13 : f32 to vector<1x512xf32>
    %36 = arith.select %26, %34, %35 : vector<1x512xi1>, vector<1x512xf32>
    %c0_14 = arith.constant 0 : index
    %c0_15 = arith.constant 0 : index
    %37 = vector.load %arg6[%c0_14, %c0_15] : memref<1x512xf32, #tpu.memory_space<vmem>>, vector<1x512xf32>
    tpu.vector_store %arg6[%c0_14, %c0_15], %36 {strides = array<i32>} : memref<1x512xf32, #tpu.memory_space<vmem>>, vector<1x512xf32>,
    %c0_16 = arith.constant 0 : index
    %c0_17 = arith.constant 0 : index
    %38 = vector.load %arg7[%c0_16, %c0_17] : memref<1x512xf32, #tpu.memory_space<vmem>>, vector<1x512xf32>
    tpu.vector_store %arg7[%c0_16, %c0_17], %20 {strides = array<i32>} : memref<1x512xf32, #tpu.memory_space<vmem>>, vector<1x512xf32>,
    %39 = vector.shape_cast %30 : vector<1x1xf32> to vector<1x1xf32>
    %40 = vector.broadcast %39 : vector<1x1xf32> to vector<1x512xf32>
    %c0_18 = arith.constant 0 : index
    %c0_19 = arith.constant 0 : index
    %41 = vector.load %arg8[%c0_18, %c0_19] : memref<1x512xf32, #tpu.memory_space<vmem>>, vector<1x512xf32>
    tpu.vector_store %arg8[%c0_18, %c0_19], %40 {strides = array<i32>} : memref<1x512xf32, #tpu.memory_space<vmem>>, vector<1x512xf32>,
    return
  }
  func.func @transform_0(%arg0: i32) -> i32 {
    %c0_i32 = arith.constant 0 : i32
    %c0_i32_0 = arith.constant 0 : i32
    return %c0_i32 : i32
  }
  func.func @transform_1(%arg0: i32) -> (i32, i32) {
    %c0_i32 = arith.constant 0 : i32
    %c0_i32_0 = arith.constant 0 : i32
    return %arg0, %c0_i32 : i32, i32
  }
  func.func @transform_2(%arg0: i32) -> (i32, i32) {
    %c0_i32 = arith.constant 0 : i32
    %c0_i32_0 = arith.constant 0 : i32
    %c0_i32_1 = arith.constant 0 : i32
    return %c0_i32, %c0_i32_0 : i32, i32
  }
  func.func @transform_3(%arg0: i32) -> (i32, i32) {
    %c0_i32 = arith.constant 0 : i32
    %c0_i32_0 = arith.constant 0 : i32
    %c0_i32_1 = arith.constant 0 : i32
    return %c0_i32, %c0_i32_0 : i32, i32
  }
  func.func @transform_4(%arg0: i32) -> (i32, i32) {
    %c0_i32 = arith.constant 0 : i32
    %c0_i32_0 = arith.constant 0 : i32
    %c0_i32_1 = arith.constant 0 : i32
    return %c0_i32, %c0_i32_0 : i32, i32
  }
  func.func @transform_5(%arg0: i32) -> (i32, i32) {
    %c0_i32 = arith.constant 0 : i32
    %c0_i32_0 = arith.constant 0 : i32
    return %c0_i32, %arg0 : i32, i32
  }
  func.func @transform_6(%arg0: i32) -> (i32, i32) {
    %c0_i32 = arith.constant 0 : i32
    %c0_i32_0 = arith.constant 0 : i32
    return %c0_i32, %arg0 : i32, i32
  }
  func.func @transform_7(%arg0: i32) -> (i32, i32) {
    %c0_i32 = arith.constant 0 : i32
    %c0_i32_0 = arith.constant 0 : i32
    return %c0_i32, %arg0 : i32, i32
  }
}

</mosaic_0001>

<llo_original>
// kernel: tpu_custom_call.1
$region0: #{tpu_custom_call.1}
  #allocation0 [shape = 'u32[]', space=smem, size = 0x4, offset = 0x4, fixed_abs, tag = 'smem constant byte address 0x4 - core index']
  #allocation1 [shape = 'u32[144,128]{1,0:T(1,128)}', space=vmem, size = 0x12000, scoped, tag = 'internal scratch']
  #allocation2 [shape = 'f32[1]{0:T(128)S(6)}', space=smem, size = 0x200, scoped, tag = 'scoped memory for tpu_custom_call.1']
  %s0 = inlined_call_operand.<no memory space> [shape: f32[1], index: 0, kind: input, shape index: {}]
  %s1 = inlined_call_operand.vmem [shape: bf16[512,32], index: 1, kind: input, shape index: {}]
  %s2 = inlined_call_operand.vmem [shape: bf16[72,32], index: 2, kind: input, shape index: {}]
  %s3 = inlined_call_operand.vmem [shape: f32[64,1], index: 3, kind: input, shape index: {}]
  %s4 = inlined_call_operand.vmem [shape: bf16[1,64], index: 4, kind: input, shape index: {}]
  %s5 = inlined_call_operand.hbm [shape: f32[1,512], index: 5, kind: output, shape index: {0}]
  %s6 = inlined_call_operand.hbm [shape: f32[1,512], index: 6, kind: output, shape index: {1}]
  %s7 = inlined_call_operand.hbm [shape: f32[1,512], index: 7, kind: output, shape index: {2}]
  %8 = xla_tuple %s5, %s6, %s7
  %s9 = sld [smem:[#allocation0]]
  $region46: #{tpu_custom_call.1} parent=0
    _
  %s11 = ssub.s32 1, %s9
  %s12 = scalar_select 0, %s11, %s9
  %13 = sst [smem:[#allocation2]] %s0
  $region1: #{tpu_custom_call.1} parent=0
    #allocation3 [shape = 'u8[2048]{0}', space=vmem, size = 0x800, scoped, tag = 'output window, operand 0, single buffered']
    #allocation4 [shape = 's32[1]{0}', space=sflag, size = 0x4, scoped, tag = 'scoped memory for tpu_custom_call.1']
    #allocation5 [shape = 'u8[2048]{0}', space=vmem, size = 0x800, scoped, tag = 'output window, operand 1, single buffered']
    #allocation6 [shape = 's32[1]{0}', space=sflag, size = 0x4, scoped, tag = 'scoped memory for tpu_custom_call.1']
    #allocation7 [shape = 'u8[2048]{0}', space=vmem, size = 0x800, scoped, tag = 'output window, operand 2, single buffered']
    %14 = vsyncpa [#allocation4], 0
    %15 = vsyncpa [#allocation6], 0
    // Predicated region
    $region2: #{tpu_custom_call.1} parent=1 // pred_check
      _
    $region3: #{tpu_custom_call.1} parent=1 // pred_check_branch
      %17 = sbr.rel (0) target = $region5
    $region4: #{tpu_custom_call.1} parent=1 // pred_region
      _
    $region5: #{tpu_custom_call.1} parent=1 // pred_fallthru
      _
    // Predicated region
    $region6: #{tpu_custom_call.1} parent=1 // pred_check
      _
    $region7: #{tpu_custom_call.1} parent=1 // pred_check_branch
      %19 = sbr.rel (0) target = $region9
    $region8: #{tpu_custom_call.1} parent=1 // pred_region
      _
    $region9: #{tpu_custom_call.1} parent=1 // pred_fallthru
      _
    // Predicated region
    $region10: #{tpu_custom_call.1} parent=1 // pred_check
      _
    $region11: #{tpu_custom_call.1} parent=1 // pred_check_branch
      %21 = sbr.rel (0) target = $region13
    $region12: #{tpu_custom_call.1} parent=1 // pred_region
      _
    $region13: #{tpu_custom_call.1} parent=1 // pred_fallthru
      _
    // Predicated region
    $region14: #{tpu_custom_call.1} parent=1 // pred_check
      _
    $region15: #{tpu_custom_call.1} parent=1 // pred_check_branch
      %23 = sbr.rel (0) target = $region17
    $region16: #{tpu_custom_call.1} parent=1 // pred_region
      _
    $region17: #{tpu_custom_call.1} parent=1 // pred_fallthru
      _
    // Predicated region
    $region18: #{tpu_custom_call.1} parent=1 // pred_check
      _
    $region19: #{tpu_custom_call.1} parent=1 // pred_check_branch
      %25 = sbr.rel (0) target = $region21
    $region20: #{tpu_custom_call.1} parent=1 // pred_region
      _
    $region21: #{tpu_custom_call.1} parent=1 // pred_fallthru
      _
    %v27 = vld [vmem:[%s1] sm:$0xf]
    %v28 = vld [vmem:[%s1 + $0x4] sm:$0xf]
    %v29 = vld [vmem:[%s1 + $0x8] sm:$0xf]
    %v30 = vld [vmem:[%s1 + $0xc] sm:$0xf]
    %v31 = vld [vmem:[%s1 + $0x10] sm:$0xf]
    %v32 = vld [vmem:[%s1 + $0x14] sm:$0xf]
    %v33 = vld [vmem:[%s1 + $0x18] sm:$0xf]
    %v34 = vld [vmem:[%s1 + $0x1c] sm:$0xf]
    %v35 = vld [vmem:[%s1 + $0x20] sm:$0xf]
    %v36 = vld [vmem:[%s1 + $0x24] sm:$0xf]
    %v37 = vld [vmem:[%s1 + $0x28] sm:$0xf]
    %v38 = vld [vmem:[%s1 + $0x2c] sm:$0xf]
    %v39 = vld [vmem:[%s1 + $0x30] sm:$0xf]
    %v40 = vld [vmem:[%s1 + $0x34] sm:$0xf]
    %v41 = vld [vmem:[%s1 + $0x38] sm:$0xf]
    %v42 = vld [vmem:[%s1 + $0x3c] sm:$0xf]
    %v43 = vld [vmem:[%s1 + $0x40] sm:$0xf]
    %v44 = vld [vmem:[%s1 + $0x44] sm:$0xf]
    %v45 = vld [vmem:[%s1 + $0x48] sm:$0xf]
    %v46 = vld [vmem:[%s1 + $0x4c] sm:$0xf]
    %v47 = vld [vmem:[%s1 + $0x50] sm:$0xf]
    %v48 = vld [vmem:[%s1 + $0x54] sm:$0xf]
    %v49 = vld [vmem:[%s1 + $0x58] sm:$0xf]
    %v50 = vld [vmem:[%s1 + $0x5c] sm:$0xf]
    %v51 = vld [vmem:[%s1 + $0x60] sm:$0xf]
    %v52 = vld [vmem:[%s1 + $0x64] sm:$0xf]
    %v53 = vld [vmem:[%s1 + $0x68] sm:$0xf]
    %v54 = vld [vmem:[%s1 + $0x6c] sm:$0xf]
    %v55 = vld [vmem:[%s1 + $0x70] sm:$0xf]
    %v56 = vld [vmem:[%s1 + $0x74] sm:$0xf]
    %v57 = vld [vmem:[%s1 + $0x78] sm:$0xf]
    %v58 = vld [vmem:[%s1 + $0x7c] sm:$0xf]
    %v59 = vld [vmem:[%s1 + $0x80] sm:$0xf]
    %v60 = vld [vmem:[%s1 + $0x84] sm:$0xf]
    %v61 = vld [vmem:[%s1 + $0x88] sm:$0xf]
    %v62 = vld [vmem:[%s1 + $0x8c] sm:$0xf]
    %v63 = vld [vmem:[%s1 + $0x90] sm:$0xf]
    %v64 = vld [vmem:[%s1 + $0x94] sm:$0xf]
    %v65 = vld [vmem:[%s1 + $0x98] sm:$0xf]
    %v66 = vld [vmem:[%s1 + $0x9c] sm:$0xf]
    %v67 = vld [vmem:[%s1 + $0xa0] sm:$0xf]
    %v68 = vld [vmem:[%s1 + $0xa4] sm:$0xf]
    %v69 = vld [vmem:[%s1 + $0xa8] sm:$0xf]
    %v70 = vld [vmem:[%s1 + $0xac] sm:$0xf]
    %v71 = vld [vmem:[%s1 + $0xb0] sm:$0xf]
    %v72 = vld [vmem:[%s1 + $0xb4] sm:$0xf]
    %v73 = vld [vmem:[%s1 + $0xb8] sm:$0xf]
    %v74 = vld [vmem:[%s1 + $0xbc] sm:$0xf]
    %v75 = vld [vmem:[%s1 + $0xc0] sm:$0xf]
    %v76 = vld [vmem:[%s1 + $0xc4] sm:$0xf]
    %v77 = vld [vmem:[%s1 + $0xc8] sm:$0xf]
    %v78 = vld [vmem:[%s1 + $0xcc] sm:$0xf]
    %v79 = vld [vmem:[%s1 + $0xd0] sm:$0xf]
    %v80 = vld [vmem:[%s1 + $0xd4] sm:$0xf]
    %v81 = vld [vmem:[%s1 + $0xd8] sm:$0xf]
    %v82 = vld [vmem:[%s1 + $0xdc] sm:$0xf]
    %v83 = vld [vmem:[%s1 + $0xe0] sm:$0xf]
    %v84 = vld [vmem:[%s1 + $0xe4] sm:$0xf]
    %v85 = vld [vmem:[%s1 + $0xe8] sm:$0xf]
    %v86 = vld [vmem:[%s1 + $0xec] sm:$0xf]
    %v87 = vld [vmem:[%s1 + $0xf0] sm:$0xf]
    %v88 = vld [vmem:[%s1 + $0xf4] sm:$0xf]
    %v89 = vld [vmem:[%s1 + $0xf8] sm:$0xf]
    %v90 = vld [vmem:[%s1 + $0xfc] sm:$0xf]
    %v91 = vld [vmem:[%s2] sm:$0xf]
    %v92 = vld [vmem:[%s2 + $0x4] sm:$0xf]
    %v93 = vld [vmem:[%s2 + $0x8] sm:$0xf]
    %v94 = vld [vmem:[%s2 + $0xc] sm:$0xf]
    %v95 = vld [vmem:[%s2 + $0x10] sm:$0xf]
    %v96 = vld [vmem:[%s2 + $0x14] sm:$0xf]
    %v97 = vld [vmem:[%s2 + $0x18] sm:$0xf]
    %v98 = vld [vmem:[%s2 + $0x1c] sm:$0xf]
    %v99 = vld [vmem:[%s2 + $0x20] sm:$0xf]
    %v109 = vunpack.c.l.b16 %v91
    %v110 = vunpack.c.l.b16 %v92
    %v111 = vunpack.c.l.b16 %v93
    %v112 = vunpack.c.l.b16 %v94
    %v113 = vunpack.c.l.b16 %v95
    %v114 = vunpack.c.l.b16 %v96
    %v115 = vunpack.c.l.b16 %v97
    %v116 = vunpack.c.l.b16 %v98
    %v117 = vunpack.c.l.b16 %v99
    %v118 = vpack.c.b16 %v110, %v109
    %v119 = vpack.c.b16 %v112, %v111
    %v120 = vpack.c.b16 %v114, %v113
    %v121 = vpack.c.b16 %v116, %v115
    %v122 = vpack.c.b16 %v117, %v117
    %v187 = vunpack.c.l.b16 %v27
    %v188 = vunpack.c.l.b16 %v28
    %v189 = vunpack.c.l.b16 %v29
    %v190 = vunpack.c.l.b16 %v30
    %v191 = vunpack.c.l.b16 %v31
    %v192 = vunpack.c.l.b16 %v32
    %v193 = vunpack.c.l.b16 %v33
    %v194 = vunpack.c.l.b16 %v34
    %v195 = vunpack.c.l.b16 %v35
    %v196 = vunpack.c.l.b16 %v36
    %v197 = vunpack.c.l.b16 %v37
    %v198 = vunpack.c.l.b16 %v38
    %v199 = vunpack.c.l.b16 %v39
    %v200 = vunpack.c.l.b16 %v40
    %v201 = vunpack.c.l.b16 %v41
    %v202 = vunpack.c.l.b16 %v42
    %v203 = vunpack.c.l.b16 %v43
    %v204 = vunpack.c.l.b16 %v44
    %v205 = vunpack.c.l.b16 %v45
    %v206 = vunpack.c.l.b16 %v46
    %v207 = vunpack.c.l.b16 %v47
    %v208 = vunpack.c.l.b16 %v48
    %v209 = vunpack.c.l.b16 %v49
    %v210 = vunpack.c.l.b16 %v50
    %v211 = vunpack.c.l.b16 %v51
    %v212 = vunpack.c.l.b16 %v52
    %v213 = vunpack.c.l.b16 %v53
    %v214 = vunpack.c.l.b16 %v54
    %v215 = vunpack.c.l.b16 %v55
    %v216 = vunpack.c.l.b16 %v56
    %v217 = vunpack.c.l.b16 %v57
    %v218 = vunpack.c.l.b16 %v58
    %v219 = vunpack.c.l.b16 %v59
    %v220 = vunpack.c.l.b16 %v60
    %v221 = vunpack.c.l.b16 %v61
    %v222 = vunpack.c.l.b16 %v62
    %v223 = vunpack.c.l.b16 %v63
    %v224 = vunpack.c.l.b16 %v64
    %v225 = vunpack.c.l.b16 %v65
    %v226 = vunpack.c.l.b16 %v66
    %v227 = vunpack.c.l.b16 %v67
    %v228 = vunpack.c.l.b16 %v68
    %v229 = vunpack.c.l.b16 %v69
    %v230 = vunpack.c.l.b16 %v70
    %v231 = vunpack.c.l.b16 %v71
    %v232 = vunpack.c.l.b16 %v72
    %v233 = vunpack.c.l.b16 %v73
    %v234 = vunpack.c.l.b16 %v74
    %v235 = vunpack.c.l.b16 %v75
    %v236 = vunpack.c.l.b16 %v76
    %v237 = vunpack.c.l.b16 %v77
    %v238 = vunpack.c.l.b16 %v78
    %v239 = vunpack.c.l.b16 %v79
    %v240 = vunpack.c.l.b16 %v80
    %v241 = vunpack.c.l.b16 %v81
    %v242 = vunpack.c.l.b16 %v82
    %v243 = vunpack.c.l.b16 %v83
    %v244 = vunpack.c.l.b16 %v84
    %v245 = vunpack.c.l.b16 %v85
    %v246 = vunpack.c.l.b16 %v86
    %v247 = vunpack.c.l.b16 %v87
    %v248 = vunpack.c.l.b16 %v88
    %v249 = vunpack.c.l.b16 %v89
    %v250 = vunpack.c.l.b16 %v90
    %v251 = vpack.c.b16 %v188, %v187
    %v252 = vpack.c.b16 %v190, %v189
    %v253 = vpack.c.b16 %v192, %v191
    %v254 = vpack.c.b16 %v194, %v193
    %v255 = vpack.c.b16 %v196, %v195
    %v256 = vpack.c.b16 %v198, %v197
    %v257 = vpack.c.b16 %v200, %v199
    %v258 = vpack.c.b16 %v202, %v201
    %v259 = vpack.c.b16 %v204, %v203
    %v260 = vpack.c.b16 %v206, %v205
    %v261 = vpack.c.b16 %v208, %v207
    %v262 = vpack.c.b16 %v210, %v209
    %v263 = vpack.c.b16 %v212, %v211
    %v264 = vpack.c.b16 %v214, %v213
    %v265 = vpack.c.b16 %v216, %v215
    %v266 = vpack.c.b16 %v218, %v217
    %v267 = vpack.c.b16 %v220, %v219
    %v268 = vpack.c.b16 %v222, %v221
    %v269 = vpack.c.b16 %v224, %v223
    %v270 = vpack.c.b16 %v226, %v225
    %v271 = vpack.c.b16 %v228, %v227
    %v272 = vpack.c.b16 %v230, %v229
    %v273 = vpack.c.b16 %v232, %v231
    %v274 = vpack.c.b16 %v234, %v233
    %v275 = vpack.c.b16 %v236, %v235
    %v276 = vpack.c.b16 %v238, %v237
    %v277 = vpack.c.b16 %v240, %v239
    %v278 = vpack.c.b16 %v242, %v241
    %v279 = vpack.c.b16 %v244, %v243
    %v280 = vpack.c.b16 %v246, %v245
    %v281 = vpack.c.b16 %v248, %v247
    %v282 = vpack.c.b16 %v250, %v249
    %vm283 = vcmask 261120
    %v285 = vsel %vm283, %v118, 0
    %v288 = vsel %vm283, %v119, 0
    %v291 = vsel %vm283, %v120, 0
    %v294 = vsel %vm283, %v121, 0
    %v297 = vsel %vm283, %v122, 0
    %v300 = vsel %vm283, %v251, 0
    %v303 = vsel %vm283, %v252, 0
    %v306 = vsel %vm283, %v253, 0
    %v309 = vsel %vm283, %v254, 0
    %v312 = vsel %vm283, %v255, 0
    %v315 = vsel %vm283, %v256, 0
    %v318 = vsel %vm283, %v257, 0
    %v321 = vsel %vm283, %v258, 0
    %v324 = vsel %vm283, %v259, 0
    %v327 = vsel %vm283, %v260, 0
    %v330 = vsel %vm283, %v261, 0
    %v333 = vsel %vm283, %v262, 0
    %v336 = vsel %vm283, %v263, 0
    %v339 = vsel %vm283, %v264, 0
    %v342 = vsel %vm283, %v265, 0
    %v345 = vsel %vm283, %v266, 0
    %v348 = vsel %vm283, %v267, 0
    %v351 = vsel %vm283, %v268, 0
    %v354 = vsel %vm283, %v269, 0
    %v357 = vsel %vm283, %v270, 0
    %v360 = vsel %vm283, %v271, 0
    %v363 = vsel %vm283, %v272, 0
    %v366 = vsel %vm283, %v273, 0
    %v369 = vsel %vm283, %v274, 0
    %v372 = vsel %vm283, %v275, 0
    %v375 = vsel %vm283, %v276, 0
    %v378 = vsel %vm283, %v277, 0
    %v381 = vsel %vm283, %v278, 0
    %v384 = vsel %vm283, %v279, 0
    %v387 = vsel %vm283, %v280, 0
    %v390 = vsel %vm283, %v281, 0
    %v393 = vsel %vm283, %v282, 0
    %395 = vmatprep.subr.bf16.mxu0 0
    %396 = vmatpush1.bf16.xpose.msra.mxu0 %v300
    %397 = vmatprep.subr.bf16.mxu0 0
    %398 = vmatpush1.bf16.xpose.msra.mxu0 %v303
    %399 = vmatprep.subr.bf16.mxu0 0
    %400 = vmatpush1.bf16.xpose.msra.mxu0 %v306
    %401 = vmatprep.subr.bf16.mxu0 0
    %402 = vmatpush1.bf16.xpose.msra.mxu0 %v309
    %403 = vmatprep.subr.bf16.mxu0 0
    %404 = vmatpush1.bf16.xpose.msra.mxu0 %v312
    %405 = vmatprep.subr.bf16.mxu0 0
    %406 = vmatpush1.bf16.xpose.msra.mxu0 %v315
    %407 = vmatprep.subr.bf16.mxu0 0
    %408 = vmatpush1.bf16.xpose.msra.mxu0 %v318
    %409 = vmatprep.subr.bf16.mxu0 0
    %410 = vmatpush1.bf16.xpose.msra.mxu0 %v321
    %411 = vmatprep.subr.bf16.mxu0 0
    %412 = vmatpush1.bf16.xpose.msra.mxu0 %v324
    %413 = vmatprep.subr.bf16.mxu0 0
    %414 = vmatpush1.bf16.xpose.msra.mxu0 %v327
    %415 = vmatprep.subr.bf16.mxu0 0
    %416 = vmatpush1.bf16.xpose.msra.mxu0 %v330
    %417 = vmatprep.subr.bf16.mxu0 0
    %418 = vmatpush1.bf16.xpose.msra.mxu0 %v333
    %419 = vmatprep.subr.bf16.mxu0 0
    %420 = vmatpush1.bf16.xpose.msra.mxu0 %v336
    %421 = vmatprep.subr.bf16.mxu0 0
    %422 = vmatpush1.bf16.xpose.msra.mxu0 %v339
    %423 = vmatprep.subr.bf16.mxu0 0
    %424 = vmatpush1.bf16.xpose.msra.mxu0 %v342
    %425 = vmatprep.subr.bf16.mxu0 0
    %426 = vmatpush1.bf16.xpose.msra.mxu0 %v345
    %427 = vmatprep.mubr.bf16.mxu0 0
    %428 = vmatmul.mubr.bf16.gmra.mrb[0].mxu0 %v285
    %v429 = vpop.f32.mrb[0].mxu0
    %v430 = vadd.f32 0.0, %v429
    %v431 = vpop.f32.mrb[0].mxu0
    %v432 = vadd.f32 0.0, %v431
    %v433 = vpop.f32.mrb[0].mxu0
    %v434 = vadd.f32 0.0, %v433
    %v435 = vpop.f32.mrb[0].mxu0
    %v436 = vadd.f32 0.0, %v435
    %437 = vmatprep.mubr.bf16.mxu0 0
    %438 = vmatmul.mubr.bf16.gmra.mrb[0].mxu0 %v288
    %v439 = vpop.f32.mrb[0].mxu0
    %v440 = vadd.f32 0.0, %v439
    %v441 = vpop.f32.mrb[0].mxu0
    %v442 = vadd.f32 0.0, %v441
    %v443 = vpop.f32.mrb[0].mxu0
    %v444 = vadd.f32 0.0, %v443
    %v445 = vpop.f32.mrb[0].mxu0
    %v446 = vadd.f32 0.0, %v445
    %447 = vmatprep.mubr.bf16.mxu0 0
    %448 = vmatmul.mubr.bf16.gmra.mrb[0].mxu0 %v291
    %v449 = vpop.f32.mrb[0].mxu0
    %v450 = vadd.f32 0.0, %v449
    %v451 = vpop.f32.mrb[0].mxu0
    %v452 = vadd.f32 0.0, %v451
    %v453 = vpop.f32.mrb[0].mxu0
    %v454 = vadd.f32 0.0, %v453
    %v455 = vpop.f32.mrb[0].mxu0
    %v456 = vadd.f32 0.0, %v455
    %457 = vmatprep.mubr.bf16.mxu0 0
    %458 = vmatmul.mubr.bf16.gmra.mrb[0].mxu0 %v294
    %v459 = vpop.f32.mrb[0].mxu0
    %v460 = vadd.f32 0.0, %v459
    %v461 = vpop.f32.mrb[0].mxu0
    %v462 = vadd.f32 0.0, %v461
    %v463 = vpop.f32.mrb[0].mxu0
    %v464 = vadd.f32 0.0, %v463
    %v465 = vpop.f32.mrb[0].mxu0
    %v466 = vadd.f32 0.0, %v465
    %467 = vmatprep.mubr.bf16.mxu0 0
    %468 = vmatmul.mubr.bf16.gmra.mrb[0].mxu0 %v297
    %v469 = vpop.f32.mrb[0].mxu0
    %v470 = vadd.f32 0.0, %v469
    %v471 = vpop.f32.mrb[0].mxu0
    %v472 = vadd.f32 0.0, %v471
    %v473 = vpop.f32.mrb[0].mxu0
    %v474 = vpop.f32.mrb[0].mxu0
    %475 = vdwg.mxu0
    %476 = vmatprep.subr.bf16.mxu0 0
    %477 = vmatpush1.bf16.xpose.msra.mxu0 %v348
    %478 = vmatprep.subr.bf16.mxu0 0
    %479 = vmatpush1.bf16.xpose.msra.mxu0 %v351
    %480 = vmatprep.subr.bf16.mxu0 0
    %481 = vmatpush1.bf16.xpose.msra.mxu0 %v354
    %482 = vmatprep.subr.bf16.mxu0 0
    %483 = vmatpush1.bf16.xpose.msra.mxu0 %v357
    %484 = vmatprep.subr.bf16.mxu0 0
    %485 = vmatpush1.bf16.xpose.msra.mxu0 %v360
    %486 = vmatprep.subr.bf16.mxu0 0
    %487 = vmatpush1.bf16.xpose.msra.mxu0 %v363
    %488 = vmatprep.subr.bf16.mxu0 0
    %489 = vmatpush1.bf16.xpose.msra.mxu0 %v366
    %490 = vmatprep.subr.bf16.mxu0 0
    %491 = vmatpush1.bf16.xpose.msra.mxu0 %v369
    %492 = vmatprep.subr.bf16.mxu0 0
    %493 = vmatpush1.bf16.xpose.msra.mxu0 %v372
    %494 = vmatprep.subr.bf16.mxu0 0
    %495 = vmatpush1.bf16.xpose.msra.mxu0 %v375
    %496 = vmatprep.subr.bf16.mxu0 0
    %497 = vmatpush1.bf16.xpose.msra.mxu0 %v378
    %498 = vmatprep.subr.bf16.mxu0 0
    %499 = vmatpush1.bf16.xpose.msra.mxu0 %v381
    %500 = vmatprep.subr.bf16.mxu0 0
    %501 = vmatpush1.bf16.xpose.msra.mxu0 %v384
    %502 = vmatprep.subr.bf16.mxu0 0
    %503 = vmatpush1.bf16.xpose.msra.mxu0 %v387
    %504 = vmatprep.subr.bf16.mxu0 0
    %505 = vmatpush1.bf16.xpose.msra.mxu0 %v390
    %506 = vmatprep.subr.bf16.mxu0 0
    %507 = vmatpush1.bf16.xpose.msra.mxu0 %v393
    %508 = vmatprep.mubr.bf16.mxu0 0
    %509 = vmatmul.mubr.bf16.gmra.mrb[0].mxu0 %v285
    %v510 = vpop.f32.mrb[0].mxu0
    %v511 = vadd.f32 0.0, %v510
    %v512 = vpop.f32.mrb[0].mxu0
    %v513 = vadd.f32 0.0, %v512
    %v514 = vpop.f32.mrb[0].mxu0
    %v515 = vadd.f32 0.0, %v514
    %v516 = vpop.f32.mrb[0].mxu0
    %v517 = vadd.f32 0.0, %v516
    %518 = vmatprep.mubr.bf16.mxu0 0
    %519 = vmatmul.mubr.bf16.gmra.mrb[0].mxu0 %v288
    %v520 = vpop.f32.mrb[0].mxu0
    %v521 = vadd.f32 0.0, %v520
    %v522 = vpop.f32.mrb[0].mxu0
    %v523 = vadd.f32 0.0, %v522
    %v524 = vpop.f32.mrb[0].mxu0
    %v525 = vadd.f32 0.0, %v524
    %v526 = vpop.f32.mrb[0].mxu0
    %v527 = vadd.f32 0.0, %v526
    %528 = vmatprep.mubr.bf16.mxu0 0
    %529 = vmatmul.mubr.bf16.gmra.mrb[0].mxu0 %v291
    %v530 = vpop.f32.mrb[0].mxu0
    %v531 = vadd.f32 0.0, %v530
    %v532 = vpop.f32.mrb[0].mxu0
    %v533 = vadd.f32 0.0, %v532
    %v534 = vpop.f32.mrb[0].mxu0
    %v535 = vadd.f32 0.0, %v534
    %v536 = vpop.f32.mrb[0].mxu0
    %v537 = vadd.f32 0.0, %v536
    %538 = vmatprep.mubr.bf16.mxu0 0
    %539 = vmatmul.mubr.bf16.gmra.mrb[0].mxu0 %v294
    %v540 = vpop.f32.mrb[0].mxu0
    %v541 = vadd.f32 0.0, %v540
    %v542 = vpop.f32.mrb[0].mxu0
    %v543 = vadd.f32 0.0, %v542
    %v544 = vpop.f32.mrb[0].mxu0
    %v545 = vadd.f32 0.0, %v544
    %v546 = vpop.f32.mrb[0].mxu0
    %v547 = vadd.f32 0.0, %v546
    %548 = vmatprep.mubr.bf16.mxu0 0
    %549 = vmatmul.mubr.bf16.gmra.mrb[0].mxu0 %v297
    %v550 = vpop.f32.mrb[0].mxu0
    %v551 = vadd.f32 0.0, %v550
    %v552 = vpop.f32.mrb[0].mxu0
    %v553 = vadd.f32 0.0, %v552
    %v554 = vpop.f32.mrb[0].mxu0
    %v555 = vpop.f32.mrb[0].mxu0
    %556 = vdwg.mxu0
    %v557 = vld [vmem:[%s3] sm:$0xff]
    %v558 = vld [vmem:[%s3 + $0x8] sm:$0xff]
    %v559 = vld [vmem:[%s3 + $0x10] sm:$0xff]
    %v560 = vld [vmem:[%s3 + $0x18] sm:$0xff]
    %v561 = vld [vmem:[%s3 + $0x20] sm:$0xff]
    %v562 = vld [vmem:[%s3 + $0x28] sm:$0xff]
    %v563 = vld [vmem:[%s3 + $0x30] sm:$0xff]
    %v564 = vld [vmem:[%s3 + $0x38] sm:$0xff]
    %566 = vset.pattern.permute.xlu0 0
    %567 = vperm.xlu0 %566, %v557
    %v568 = vpop.permute.xlu0 %567
    %571 = vset.pattern.permute.xlu0 0
    %572 = vperm.xlu0 %571, %v558
    %v573 = vpop.permute.xlu0 %572
    %576 = vset.pattern.permute.xlu0 0
    %577 = vperm.xlu0 %576, %v559
    %v578 = vpop.permute.xlu0 %577
    %581 = vset.pattern.permute.xlu0 0
    %582 = vperm.xlu0 %581, %v560
    %v583 = vpop.permute.xlu0 %582
    %586 = vset.pattern.permute.xlu0 0
    %587 = vperm.xlu0 %586, %v561
    %v588 = vpop.permute.xlu0 %587
    %591 = vset.pattern.permute.xlu0 0
    %592 = vperm.xlu0 %591, %v562
    %v593 = vpop.permute.xlu0 %592
    %596 = vset.pattern.permute.xlu0 0
    %597 = vperm.xlu0 %596, %v563
    %v598 = vpop.permute.xlu0 %597
    %601 = vset.pattern.permute.xlu0 0
    %602 = vperm.xlu0 %601, %v564
    %v603 = vpop.permute.xlu0 %602
    %v605 = vadd.f32 %v434, %v568
    %v606 = vadd.f32 %v436, %v568
    %v607 = vadd.f32 %v515, %v568
    %v608 = vadd.f32 %v517, %v568
    %v609 = vadd.f32 %v440, %v573
    %v610 = vadd.f32 %v442, %v573
    %v611 = vadd.f32 %v521, %v573
    %v612 = vadd.f32 %v523, %v573
    %v613 = vadd.f32 %v444, %v578
    %v614 = vadd.f32 %v446, %v578
    %v615 = vadd.f32 %v525, %v578
    %v616 = vadd.f32 %v527, %v578
    %v617 = vadd.f32 %v450, %v583
    %v618 = vadd.f32 %v452, %v583
    %v619 = vadd.f32 %v531, %v583
    %v620 = vadd.f32 %v533, %v583
    %v621 = vadd.f32 %v454, %v588
    %v622 = vadd.f32 %v456, %v588
    %v623 = vadd.f32 %v535, %v588
    %v624 = vadd.f32 %v537, %v588
    %v625 = vadd.f32 %v460, %v593
    %v626 = vadd.f32 %v462, %v593
    %v627 = vadd.f32 %v541, %v593
    %v628 = vadd.f32 %v543, %v593
    %v629 = vadd.f32 %v464, %v598
    %v630 = vadd.f32 %v466, %v598
    %v631 = vadd.f32 %v545, %v598
    %v632 = vadd.f32 %v547, %v598
    %v633 = vadd.f32 %v470, %v603
    %v634 = vadd.f32 %v472, %v603
    %v635 = vadd.f32 %v551, %v603
    %v636 = vadd.f32 %v553, %v603
    %v637 = vmax.f32 %v605, 0.0
    %v638 = vmax.f32 %v606, 0.0
    %v639 = vmax.f32 %v607, 0.0
    %v640 = vmax.f32 %v608, 0.0
    %v641 = vmax.f32 %v609, 0.0
    %v642 = vmax.f32 %v610, 0.0
    %v643 = vmax.f32 %v611, 0.0
    %v644 = vmax.f32 %v612, 0.0
    %v645 = vmax.f32 %v613, 0.0
    %v646 = vmax.f32 %v614, 0.0
    %v647 = vmax.f32 %v615, 0.0
    %v648 = vmax.f32 %v616, 0.0
    %v649 = vmax.f32 %v617, 0.0
    %v650 = vmax.f32 %v618, 0.0
    %v651 = vmax.f32 %v619, 0.0
    %v652 = vmax.f32 %v620, 0.0
    %v653 = vmax.f32 %v621, 0.0
    %v654 = vmax.f32 %v622, 0.0
    %v655 = vmax.f32 %v623, 0.0
    %v656 = vmax.f32 %v624, 0.0
    %v657 = vmax.f32 %v625, 0.0
    %v658 = vmax.f32 %v626, 0.0
    %v659 = vmax.f32 %v627, 0.0
    %v660 = vmax.f32 %v628, 0.0
    %v661 = vmax.f32 %v629, 0.0
    %v662 = vmax.f32 %v630, 0.0
    %v663 = vmax.f32 %v631, 0.0
    %v664 = vmax.f32 %v632, 0.0
    %v665 = vmax.f32 %v633, 0.0
    %v666 = vmax.f32 %v634, 0.0
    %v667 = vmax.f32 %v635, 0.0
    %v668 = vmax.f32 %v636, 0.0
    %v669 = vld [vmem:[%s4] sm:$0x1]
    %v670 = vpack.c.bf16 %v641, %v637
    %v671 = vpack.c.bf16 %v642, %v638
    %v672 = vpack.c.bf16 %v643, %v639
    %v673 = vpack.c.bf16 %v644, %v640
    %v674 = vpack.c.bf16 %v649, %v645
    %v675 = vpack.c.bf16 %v650, %v646
    %v676 = vpack.c.bf16 %v651, %v647
    %v677 = vpack.c.bf16 %v652, %v648
    %v678 = vpack.c.bf16 %v657, %v653
    %v679 = vpack.c.bf16 %v658, %v654
    %v680 = vpack.c.bf16 %v659, %v655
    %v681 = vpack.c.bf16 %v660, %v656
    %v682 = vpack.c.bf16 %v665, %v661
    %v683 = vpack.c.bf16 %v666, %v662
    %v684 = vpack.c.bf16 %v667, %v663
    %v685 = vpack.c.bf16 %v668, %v664
    %s686 = sld [smem:[#allocation2]]
    %v687 = vstv %s686
    %vm688 = vcmask 523264
    %v690 = vsel %vm688, %v669, 0
    %692 = vmatprep.subr.bf16.mxu0 %v671
    %693 = vmatpush1.bf16.msra.mxu0 %v670
    %694 = vmatprep.subr.bf16.mxu0 %v675
    %695 = vmatpush1.bf16.msra.mxu0 %v674
    %696 = vmatprep.subr.bf16.mxu0 %v679
    %697 = vmatpush1.bf16.msra.mxu0 %v678
    %698 = vmatprep.subr.bf16.mxu0 %v683
    %699 = vmatpush1.bf16.msra.mxu0 %v682
    %700 = vmatprep.subr.bf16.mxu0 0
    %701 = vmatpush1.bf16.msra.mxu0 0
    %702 = vmatprep.subr.bf16.mxu0 0
    %703 = vmatpush1.bf16.msra.mxu0 0
    %704 = vmatprep.subr.bf16.mxu0 0
    %705 = vmatpush1.bf16.msra.mxu0 0
    %706 = vmatprep.subr.bf16.mxu0 0
    %707 = vmatpush1.bf16.msra.mxu0 0
    %708 = vmatprep.subr.bf16.mxu0 0
    %709 = vmatpush1.bf16.msra.mxu0 0
    %710 = vmatprep.subr.bf16.mxu0 0
    %711 = vmatpush1.bf16.msra.mxu0 0
    %712 = vmatprep.subr.bf16.mxu0 0
    %713 = vmatpush1.bf16.msra.mxu0 0
    %714 = vmatprep.subr.bf16.mxu0 0
    %715 = vmatpush1.bf16.msra.mxu0 0
    %716 = vmatprep.subr.bf16.mxu0 0
    %717 = vmatpush1.bf16.msra.mxu0 0
    %718 = vmatprep.subr.bf16.mxu0 0
    %719 = vmatpush1.bf16.msra.mxu0 0
    %720 = vmatprep.subr.bf16.mxu0 0
    %721 = vmatpush1.bf16.msra.mxu0 0
    %722 = vmatprep.subr.bf16.mxu0 0
    %723 = vmatpush1.bf16.msra.mxu0 0
    %724 = vmatprep.mubr.bf16.mxu0 0
    %725 = vmatmul.mubr.bf16.gmra.mrb[0].mxu0 %v690
    %v726 = vpop.f32.mrb[0].mxu0
    %v727 = vadd.f32 %v687, %v726
    %v728 = vpop.f32.mrb[0].mxu0
    %v729 = vadd.f32 %v687, %v728
    %v730 = vpop.f32.mrb[0].mxu0
    %v731 = vpop.f32.mrb[0].mxu0
    %732 = vdwg.mxu0
    %733 = vmatprep.subr.bf16.mxu0 %v673
    %734 = vmatpush1.bf16.msra.mxu0 %v672
    %735 = vmatprep.subr.bf16.mxu0 %v677
    %736 = vmatpush1.bf16.msra.mxu0 %v676
    %737 = vmatprep.subr.bf16.mxu0 %v681
    %738 = vmatpush1.bf16.msra.mxu0 %v680
    %739 = vmatprep.subr.bf16.mxu0 %v685
    %740 = vmatpush1.bf16.msra.mxu0 %v684
    %741 = vmatprep.subr.bf16.mxu0 0
    %742 = vmatpush1.bf16.msra.mxu0 0
    %743 = vmatprep.subr.bf16.mxu0 0
    %744 = vmatpush1.bf16.msra.mxu0 0
    %745 = vmatprep.subr.bf16.mxu0 0
    %746 = vmatpush1.bf16.msra.mxu0 0
    %747 = vmatprep.subr.bf16.mxu0 0
    %748 = vmatpush1.bf16.msra.mxu0 0
    %749 = vmatprep.subr.bf16.mxu0 0
    %750 = vmatpush1.bf16.msra.mxu0 0
    %751 = vmatprep.subr.bf16.mxu0 0
    %752 = vmatpush1.bf16.msra.mxu0 0
    %753 = vmatprep.subr.bf16.mxu0 0
    %754 = vmatpush1.bf16.msra.mxu0 0
    %755 = vmatprep.subr.bf16.mxu0 0
    %756 = vmatpush1.bf16.msra.mxu0 0
    %757 = vmatprep.subr.bf16.mxu0 0
    %758 = vmatpush1.bf16.msra.mxu0 0
    %759 = vmatprep.subr.bf16.mxu0 0
    %760 = vmatpush1.bf16.msra.mxu0 0
    %761 = vmatprep.subr.bf16.mxu0 0
    %762 = vmatpush1.bf16.msra.mxu0 0
    %763 = vmatprep.subr.bf16.mxu0 0
    %764 = vmatpush1.bf16.msra.mxu0 0
    %765 = vmatprep.mubr.bf16.mxu0 0
    %766 = vmatmul.mubr.bf16.gmra.mrb[0].mxu0 %v690
    %v767 = vpop.f32.mrb[0].mxu0
    %v768 = vadd.f32 %v687, %v767
    %v769 = vpop.f32.mrb[0].mxu0
    %v770 = vadd.f32 %v687, %v769
    %v771 = vpop.f32.mrb[0].mxu0
    %v772 = vpop.f32.mrb[0].mxu0
    %773 = vdwg.mxu0
    %v774 = vxor.u32 %v727, 2147483648
    %v775 = vxor.u32 %v729, 2147483648
    %v776 = vxor.u32 %v768, 2147483648
    %v777 = vxor.u32 %v770, 2147483648
    %v778 = vmul.f32 %v774, 1.442695
    %v779 = vpow.pop %v778
    %v780 = vmul.f32 %v775, 1.442695
    %v781 = vpow.pop %v780
    %v782 = vmul.f32 %v776, 1.442695
    %v783 = vpow.pop %v782
    %v784 = vmul.f32 %v777, 1.442695
    %v785 = vpow.pop %v784
    %v786 = vadd.f32 %v779, 1.0
    %v787 = vadd.f32 %v781, 1.0
    %v788 = vadd.f32 %v783, 1.0
    %v789 = vadd.f32 %v785, 1.0
    %v790 = vrcp.pop %v786
    %v791 = vmul.f32 1.0, %v790
    %v792 = vrcp.pop %v787
    %v793 = vmul.f32 1.0, %v792
    %v794 = vrcp.pop %v788
    %v795 = vmul.f32 1.0, %v794
    %v796 = vrcp.pop %v789
    %v797 = vmul.f32 1.0, %v796
    %s798 = smul.u32 0, 512
    %v799 = vlaneseq
    %v800 = vand.u32 %v799, 127
    %v801 = vadd.s32 %v800, 128
    %v802 = vadd.s32 %v800, 256
    %v803 = vadd.s32 %v800, 384
    %v804 = vstv %s798
    %v805 = vadd.s32 %v804, %v800
    %v806 = vadd.s32 %v804, %v801
    %v807 = vadd.s32 %v804, %v802
    %v808 = vadd.s32 %v804, %v803
    %vm809 = vcmp.lt.s32.totalorder %v805, 8
    %vm810 = vcmp.lt.s32.totalorder %v806, 8
    %vm811 = vcmp.lt.s32.totalorder %v807, 8
    %vm812 = vcmp.lt.s32.totalorder %v808, 8
    %v813 = vsel %vm809, %v430, -1e+30
    %v814 = vsel %vm810, %v432, -1e+30
    %v815 = vsel %vm811, %v511, -1e+30
    %v816 = vsel %vm812, %v513, -1e+30
    %vm817 = vcmask 1040384
    %v818 = vsel %vm817, %v813, -inf
    %v819 = vsel %vm817, %v814, -inf
    %v820 = vsel %vm817, %v815, -inf
    %v821 = vsel %vm817, %v816, -inf
    %v822 = vmax.f32 %v818, %v819
    %v823 = vmax.f32 %v820, %v821
    %v824 = vmax.f32 %v822, %v823
    %825 = vmax.xlane.f32.xlu0 %v824
    %v826 = vpop.xlane.xlu0 %825
    %v827 = vsub.f32 %v813, %v826
    %v828 = vsub.f32 %v814, %v826
    %v829 = vsub.f32 %v815, %v826
    %v830 = vsub.f32 %v816, %v826
    %v831 = vmul.f32 %v827, 1.442695
    %v832 = vpow.pop %v831
    %v833 = vmul.f32 %v828, 1.442695
    %v834 = vpow.pop %v833
    %v835 = vmul.f32 %v829, 1.442695
    %v836 = vpow.pop %v835
    %v837 = vmul.f32 %v830, 1.442695
    %v838 = vpow.pop %v837
    %v839 = vmul.f32 %v832, %v791
    %v840 = vmul.f32 %v834, %v793
    %v841 = vmul.f32 %v836, %v795
    %v842 = vmul.f32 %v838, %v797
    %v843 = vsel %vm809, %v839, 0.0
    %v844 = vsel %vm810, %v840, 0.0
    %v845 = vsel %vm811, %v841, 0.0
    %v846 = vsel %vm812, %v842, 0.0
    %v851 = vcombine.low %v843, %v844
    %v852 = vcombine.low %v845, %v846
    %v854 = vunpack.c.l.s4 1966171168
    %v855 = vunpack.c.0.s8 %v854
    %v856 = vlaneseq
    %v857 = vshrl.u32 %v856, 7
    %v858 = vsub.s32 %v855, %v857
    %v859 = vrot.slane %v851, %v858
    %v861 = vunpack.c.l.s4 1966171168
    %v862 = vunpack.c.0.s8 %v861
    %v863 = vlaneseq
    %v864 = vshrl.u32 %v863, 7
    %v865 = vsub.s32 %v862, %v864
    %v866 = vrot.slane %v852, %v865
    %v867 = vcombine.low %v859, %v866
    %v869 = vunpack.c.l.s4 1966171168
    %v870 = vunpack.c.0.s8 %v869
    %v871 = vlaneseq
    %v872 = vshrl.u32 %v871, 7
    %v873 = vsub.s32 %v870, %v872
    %v874 = vrot.slane %v867, %v873
    %v876 = vlaneseq
    %vm877 = vcmp.ge.s32.totalorder %v876, 0
    %vm878 = vcmp.lt.s32.totalorder %v876, 512
    %vm879 = vmand %vm877, %vm878
    %880 = vst.msk [vmem:[#allocation3] sm:$0xf] %vm879, %v874
    %v885 = vcombine.low %v791, %v793
    %v886 = vcombine.low %v795, %v797
    %v888 = vunpack.c.l.s4 1966171168
    %v889 = vunpack.c.0.s8 %v888
    %v890 = vlaneseq
    %v891 = vshrl.u32 %v890, 7
    %v892 = vsub.s32 %v889, %v891
    %v893 = vrot.slane %v885, %v892
    %v895 = vunpack.c.l.s4 1966171168
    %v896 = vunpack.c.0.s8 %v895
    %v897 = vlaneseq
    %v898 = vshrl.u32 %v897, 7
    %v899 = vsub.s32 %v896, %v898
    %v900 = vrot.slane %v886, %v899
    %v901 = vcombine.low %v893, %v900
    %v903 = vunpack.c.l.s4 1966171168
    %v904 = vunpack.c.0.s8 %v903
    %v905 = vlaneseq
    %v906 = vshrl.u32 %v905, 7
    %v907 = vsub.s32 %v904, %v906
    %v908 = vrot.slane %v901, %v907
    %910 = vst.msk [vmem:[#allocation5] sm:$0xf] %vm879, %v908
    %v912 = vlaneseq
    %v913 = vshrl.u32 %v912, 7
    %v914 = vsub.s32 0, %v913
    %v915 = vrot.slane %v826, %v914
    %917 = vst.msk [vmem:[#allocation7] sm:$0xf] %vm879, %v915
    // Predicated region
    $region22: #{tpu_custom_call.1} parent=1 // pred_check
      _
    $region23: #{tpu_custom_call.1} parent=1 // pred_check_branch
      %919 = sbr.rel (0) target = $region25
    $region24: #{tpu_custom_call.1} parent=1 // pred_region
      %s921 = ssub.s32 64, 64
      %922 = vsyncadd [#allocation4], %s921
      %s924 = sshll.u32 [#allocation3], 4
      %s925 = int_to_ptr.vmem [resolvable:$true] %s924
      %927 = dma.vmem_to_hbm [thread:$0]  %s925, 64, %s5, [#allocation4]
    $region25: #{tpu_custom_call.1} parent=1 // pred_fallthru
      _
    // Predicated region
    $region26: #{tpu_custom_call.1} parent=1 // pred_check
      _
    $region27: #{tpu_custom_call.1} parent=1 // pred_check_branch
      %929 = sbr.rel (0) target = $region29
    $region28: #{tpu_custom_call.1} parent=1 // pred_region
      %s931 = ssub.s32 64, 64
      %932 = vsyncadd [#allocation6], %s931
      %s934 = sshll.u32 [#allocation5], 4
      %s935 = int_to_ptr.vmem [resolvable:$true] %s934
      %937 = dma.vmem_to_hbm [thread:$0]  %s935, 64, %s6, [#allocation6]
    $region29: #{tpu_custom_call.1} parent=1 // pred_fallthru
      _
    // Predicated region
    $region30: #{tpu_custom_call.1} parent=1 // pred_check
      _
    $region31: #{tpu_custom_call.1} parent=1 // pred_check_branch
      %939 = sbr.rel (0) target = $region33
    $region32: #{tpu_custom_call.1} parent=1 // pred_region
      %s941 = ssub.s32 64, 64
      %942 = vsyncadd [#allocation6], %s941
      %s944 = sshll.u32 [#allocation7], 4
      %s945 = int_to_ptr.vmem [resolvable:$true] %s944
      %947 = dma.vmem_to_hbm [thread:$0]  %s945, 64, %s7, [#allocation6]
    $region33: #{tpu_custom_call.1} parent=1 // pred_fallthru
      _
    // Predicated region
    $region34: #{tpu_custom_call.1} parent=1 // pred_check
      _
    $region35: #{tpu_custom_call.1} parent=1 // pred_check_branch
      %949 = sbr.rel (0) target = $region37
    $region36: #{tpu_custom_call.1} parent=1 // pred_region
      %950 = dma.done [#allocation4], 64
    $region37: #{tpu_custom_call.1} parent=1 // pred_fallthru
      _
    // Predicated region
    $region38: #{tpu_custom_call.1} parent=1 // pred_check
      _
    $region39: #{tpu_custom_call.1} parent=1 // pred_check_branch
      %952 = sbr.rel (0) target = $region41
    $region40: #{tpu_custom_call.1} parent=1 // pred_region
      %953 = dma.done [#allocation6], 64
    $region41: #{tpu_custom_call.1} parent=1 // pred_fallthru
      _
    // Predicated region
    $region42: #{tpu_custom_call.1} parent=1 // pred_check
      _
    $region43: #{tpu_custom_call.1} parent=1 // pred_check_branch
      %955 = sbr.rel (0) target = $region45
    $region44: #{tpu_custom_call.1} parent=1 // pred_region
      %956 = dma.done [#allocation6], 64
    $region45: #{tpu_custom_call.1} parent=1 // pred_fallthru
      _
    %957 = vsyncpa [#allocation4], 1
    %958 = vsyncpa [#allocation6], 1

</llo_original>
